<compile_context>
chip_gen: v7x
topology: tpu7x:2x2x1
jax: 0.10.0
libtpu: 0.0.40
codegen_flags: <defaults>
</compile_context>

<pallas_src>
import functools

import jax
import jax.numpy as jnp
from jax import lax
from jax.experimental import pallas as pl
from jax.experimental.pallas import tpu as pltpu

_MASK_VALUE = -1e30  # finite "-inf" for masked (ragged) vocab columns


def _round_up(a, b):
    return (a + b - 1) // b * b


def _vmem_capacity_bytes():
    """Physical VMEM per core; conservative fallback if the query fails."""
    try:
        info = pltpu.get_tpu_info()
        cap = int(getattr(info, "vmem_capacity_bytes", 0) or 0)
        if cap > 0:
            return cap
    except Exception:
        pass
    return 64 * 1024 * 1024  # v7x-sized fallback (smallest of v5e/v6e/v7x)


def _mlm_fused_kernel(x_ref, w_ref, b_ref, o_ref, m_sc, l_sc, lse_sc, *,
                      vocab, tv):
    """Fused linear + log_softmax.

    Grid = (row_tiles, 2, vocab_tiles).  For each row tile, sweep p == 0 over
    the vocab tiles accumulates an online logsumexp into VMEM scratch; sweep
    p == 1 recomputes each logits tile and writes log-probs directly.
    """
    p = pl.program_id(1)
    j = pl.program_id(2)
    nv = pl.num_programs(2)

    # (tm, H) x (H, tv) on the MXU; bf16 inputs, f32 accumulation.
    logits = jnp.dot(x_ref[...], w_ref[...], preferred_element_type=jnp.float32)
    logits = logits + b_ref[...].astype(jnp.float32)

    if vocab % tv != 0:
        # Ragged last vocab tile: out-of-bounds columns hold garbage -> mask.
        col = j * tv + lax.broadcasted_iota(jnp.int32, logits.shape, 1)
        logits = jnp.where(col < vocab, logits, _MASK_VALUE)

    @pl.when(p == 0)
    def _():
        @pl.when(j == 0)
        def _():
            m_sc[...] = jnp.full(m_sc.shape, -jnp.inf, m_sc.dtype)
            l_sc[...] = jnp.zeros(l_sc.shape, l_sc.dtype)

        m_prev = m_sc[...]
        m_new = jnp.maximum(m_prev, jnp.max(logits, axis=-1, keepdims=True))
        l_sc[...] = (l_sc[...] * jnp.exp(m_prev - m_new)
                     + jnp.sum(jnp.exp(logits - m_new), axis=-1, keepdims=True))
        m_sc[...] = m_new

        @pl.when(j == nv - 1)
        def _():
            lse_sc[...] = m_sc[...] + jnp.log(l_sc[...])

    @pl.when(p == 1)
    def _():
        o_ref[...] = (logits - lse_sc[...]).astype(o_ref.dtype)


@functools.partial(
    jax.jit, static_argnames=("tm", "tv", "out_dtype", "compute_dtype"))
def masked_language_model(x, weight, bias, *, tm=512, tv=512,
                          out_dtype=None, compute_dtype=jnp.bfloat16):
    """log_softmax(x @ weight.T + bias, axis=-1).

    x: (B, L, H), weight: (V, H), bias: (V,)  ->  (B, L, V).
    """
    B, L, H = x.shape
    V, H_w = weight.shape
    assert H == H_w, "weight shape must be (vocab, d_model)"
    out_dtype = jnp.dtype(x.dtype) if out_dtype is None else jnp.dtype(out_dtype)
    cdt = jnp.dtype(x.dtype) if compute_dtype is None else jnp.dtype(compute_dtype)

    M = B * L
    x2d = x.reshape(M, H).astype(cdt)
    # One-time transpose+cast (fused in XLA): keeps the streamed weight tile
    # lane-dense on vocab and the in-kernel matmul canonical (tm,H)x(H,tv).
    w_t = weight.T.astype(cdt)                       # (H, V)
    b2d = bias.astype(jnp.float32).reshape(1, V)

    # Tile sizes.
    tm_eff = min(_round_up(int(tm), 8), _round_up(M, 8))
    tv_eff = min(_round_up(int(tv), 128), _round_up(V, 128))
    # Keep >= 2 row tiles so the "parallel" row axis can span both TensorCores
    # on megacore / v7x parts.
    if M >= 16:
        tm_eff = min(tm_eff, _round_up(pl.cdiv(M, 2), 8))

    itemsize_in = jnp.dtype(cdt).itemsize
    itemsize_out = jnp.dtype(out_dtype).itemsize

    def step_bytes(tm_e, tv_e):
        return (2 * tm_e * H * itemsize_in          # x row tile (double-buffered)
                + 2 * H * tv_e * itemsize_in        # streamed weight tile
                + 2 * tv_e * 4                      # bias tile
                + 2 * tm_e * tv_e * itemsize_out    # output tile
                + 3 * tm_e * 128 * 4)               # m/l/lse scratch (lane-padded)

    # Generation-aware VMEM budget (~96 MiB on v5e/v6e, ~48 MiB on v7x).
    vmem_budget = min(int(0.75 * _vmem_capacity_bytes()), 112 * 1024 * 1024)
    # Shrink tiles if a very large H would overflow the budget.
    # TODO(synk): for very large H add an H (contraction) grid axis with an
    # f32 VMEM accumulator instead of shrinking the row/vocab tiles.
    while step_bytes(tm_eff, tv_eff) + (4 << 20) > vmem_budget and tv_eff > 128:
        tv_eff = max(128, _round_up(tv_eff // 2, 128))
    while step_bytes(tm_eff, tv_eff) + (4 << 20) > vmem_budget and tm_eff > 8:
        tm_eff = max(8, _round_up(tm_eff // 2, 8))
    vmem_limit = max(32 << 20, step_bytes(tm_eff, tv_eff) + (8 << 20))
    vmem_limit = min(vmem_limit, max(vmem_budget, 32 << 20))

    grid = (pl.cdiv(M, tm_eff), 2, pl.cdiv(V, tv_eff))

    kernel = functools.partial(_mlm_fused_kernel, vocab=V, tv=tv_eff)

    out2d = pl.pallas_call(
        kernel,
        out_shape=jax.ShapeDtypeStruct((M, V), out_dtype),
        grid_spec=pltpu.PrefetchScalarGridSpec(
            num_scalar_prefetch=0,
            grid=grid,
            in_specs=[
                # x row tile: resident across both vocab sweeps of a row tile.
                pl.BlockSpec((tm_eff, H), lambda i, p, j: (i, 0)),
                # weight tile: streamed once per (row tile, sweep).
                pl.BlockSpec((H, tv_eff), lambda i, p, j: (0, j)),
                # bias tile.
                pl.BlockSpec((1, tv_eff), lambda i, p, j: (0, j)),
            ],
            # During sweep 0 the output block index is pinned to (i, 0) so the
            # (unwritten) buffer is never flushed; sweep 1 writes every tile.
            out_specs=pl.BlockSpec((tm_eff, tv_eff), lambda i, p, j: (i, j * p)),
            scratch_shapes=[
                pltpu.VMEM((tm_eff, 1), jnp.float32),   # running max
                pltpu.VMEM((tm_eff, 1), jnp.float32),   # running sum
                pltpu.VMEM((tm_eff, 1), jnp.float32),   # logsumexp
            ],
        ),
        compiler_params=pltpu.CompilerParams(
            dimension_semantics=("parallel", "arbitrary", "arbitrary"),
            vmem_limit_bytes=int(vmem_limit),
        ),
        cost_estimate=pl.CostEstimate(
            flops=2 * 2 * (grid[0] * tm_eff) * H * (grid[2] * tv_eff),
            transcendentals=M * V + M,
            bytes_accessed=(grid[0] * tm_eff * H * itemsize_in
                            + 2 * grid[0] * grid[2] * H * tv_eff * itemsize_in
                            + 2 * grid[0] * grid[2] * tv_eff * 4
                            + grid[0] * tm_eff * grid[2] * tv_eff * itemsize_out),
        ),
    )(x2d, w_t, b2d)

    return out2d.reshape(B, L, V)


if __name__ == "__main__":
    def reference(x, weight, bias, cast_dtype=None):
        if cast_dtype is not None:
            x = x.astype(cast_dtype).astype(jnp.float32)
            weight = weight.astype(cast_dtype).astype(jnp.float32)
        logits = jnp.einsum("blh,vh->blv", x, weight,
                            precision=lax.Precision.HIGHEST) + bias
        return jax.nn.log_softmax(logits, axis=-1)

    key = jax.random.PRNGKey(0)

    # Case 1: small shapes from the module: (B, L, H) -> (B, L, V);
    # default bf16 compute path.
    B, L, H, V = 2, 8, 32, 128
    k1, k2, k3, key = jax.random.split(key, 4)
    bound = 1.0 / (H ** 0.5)
    x = jax.random.normal(k1, (B, L, H), dtype=jnp.float32)
    w = jax.random.uniform(k2, (V, H), minval=-bound, maxval=bound, dtype=jnp.float32)
    b = jax.random.uniform(k3, (V,), minval=-bound, maxval=bound, dtype=jnp.float32)
    out = jax.block_until_ready(masked_language_model(x, w, b))
    assert out.shape == (B, L, V)
    ref_bf16 = reference(x, w, b, cast_dtype=jnp.bfloat16)
    ref_f32 = reference(x, w, b)
    assert jnp.allclose(out, ref_bf16, atol=1e-4, rtol=1e-4), \
        float(jnp.max(jnp.abs(out - ref_bf16)))
    assert jnp.allclose(out, ref_f32, atol=8e-2, rtol=8e-2), \
        float(jnp.max(jnp.abs(out - ref_f32)))

    # Case 2: ragged rows (M=18) and ragged vocab (V=200) exercising partial
    # row tiles, in-kernel vocab masking and the multi-tile online logsumexp;
    # f32 compute path checked tightly against the f32 reference.
    B, L, H, V = 2, 9, 64, 200
    k1, k2, k3, key = jax.random.split(key, 4)
    bound = 1.0 / (H ** 0.5)
    x = jax.random.normal(k1, (B, L, H), dtype=jnp.float32)
    w = jax.random.uniform(k2, (V, H), minval=-bound, maxval=bound, dtype=jnp.float32)
    b = jax.random.uniform(k3, (V,), minval=-bound, maxval=bound, dtype=jnp.float32)
    out = jax.block_until_ready(
        masked_language_model(x, w, b, tm=16, tv=128,
                              compute_dtype=jnp.float32))
    ref_f32 = reference(x, w, b)
    assert out.shape == (B, L, V)
    assert jnp.allclose(out, ref_f32, atol=1e-4, rtol=1e-4), \
        float(jnp.max(jnp.abs(out - ref_f32)))

    # Case 3: bf16 compute + bf16 output store on the same ragged shapes.
    out_bf16 = jax.block_until_ready(
        masked_language_model(x, w, b, tm=16, tv=128, out_dtype=jnp.bfloat16))
    ref_bf16 = reference(x, w, b, cast_dtype=jnp.bfloat16)
    assert out_bf16.dtype == jnp.bfloat16
    assert jnp.allclose(out_bf16.astype(jnp.float32), ref_bf16,
                        atol=8e-2, rtol=2e-2), \
        float(jnp.max(jnp.abs(out_bf16.astype(jnp.float32) - ref_bf16)))

    print("KERNEL_OK")
</pallas_src>

<mosaic_0001>
module attributes {stable_mosaic.version = 11 : i64} {
  func.func @_mlm_fused_kernel(%arg0: i32, %arg1: i32, %arg2: i32, %arg3: memref<8x32xbf16, #tpu.memory_space<vmem>>, %arg4: memref<32x128xbf16, #tpu.memory_space<vmem>>, %arg5: memref<1x128xf32, #tpu.memory_space<vmem>>, %arg6: memref<8x128xf32, #tpu.memory_space<vmem>>, %arg7: memref<8x1xf32, #tpu.memory_space<vmem>>, %arg8: memref<8x1xf32, #tpu.memory_space<vmem>>, %arg9: memref<8x1xf32, #tpu.memory_space<vmem>>) attributes {dimension_semantics = [#tpu.dimension_semantics<parallel>, #tpu.dimension_semantics<arbitrary>, #tpu.dimension_semantics<arbitrary>], iteration_bounds = array<i64: 2, 2, 1>, scalar_prefetch = 0 : i64, scratch_operands = 3 : i64, tpu.core_type = #tpu.core_type<tc>, window_params = [{transform_indices = @transform_0, window_bounds = array<i64: 8, 32>}, {transform_indices = @transform_1, window_bounds = array<i64: 32, 128>}, {transform_indices = @transform_2, window_bounds = array<i64: 1, 128>}, {transform_indices = @transform_3, window_bounds = array<i64: 8, 128>}]} {
    %c0 = arith.constant 0 : index
    %c0_0 = arith.constant 0 : index
    %0 = vector.load %arg3[%c0, %c0_0] : memref<8x32xbf16, #tpu.memory_space<vmem>>, vector<8x32xbf16>
    %c0_1 = arith.constant 0 : index
    %c0_2 = arith.constant 0 : index
    %1 = vector.load %arg4[%c0_1, %c0_2] : memref<32x128xbf16, #tpu.memory_space<vmem>>, vector<32x128xbf16>
    %cst = arith.constant dense<0.000000e+00> : vector<8x128xf32>
    %2 = tpu.matmul %0, %1, %cst {dimension_numbers = #tpu.dot_dimension_numbers<[1], [0], [0], [1], [0, 0, 1, 1], [], []>} : vector<8x32xbf16>, vector<32x128xbf16>, vector<8x128xf32> -> vector<8x128xf32>
    %c0_3 = arith.constant 0 : index
    %c0_4 = arith.constant 0 : index
    %3 = vector.load %arg5[%c0_3, %c0_4] : memref<1x128xf32, #tpu.memory_space<vmem>>, vector<1x128xf32>
    %4 = vector.broadcast %3 : vector<1x128xf32> to vector<8x128xf32>
    %5 = arith.addf %2, %4 : vector<8x128xf32>
    %c0_i32 = arith.constant 0 : i32
    %6 = arith.cmpi eq, %arg1, %c0_i32 : i32
    %7 = arith.extui %6 : i1 to i32
    %c0_i32_5 = arith.constant 0 : i32
    %8 = arith.cmpi ne, %7, %c0_i32_5 : i32
    scf.if %8 {
      %c0_i32_7 = arith.constant 0 : i32
      %12 = arith.cmpi eq, %arg2, %c0_i32_7 : i32
      %13 = arith.extui %12 : i1 to i32
      %c0_i32_8 = arith.constant 0 : i32
      %14 = arith.cmpi ne, %13, %c0_i32_8 : i32
      scf.if %14 {
        %cst_21 = arith.constant 0xFF800000 : f32
        %34 = vector.broadcast %cst_21 : f32 to vector<8x1xf32>
        %c0_22 = arith.constant 0 : index
        %c0_23 = arith.constant 0 : index
        %35 = vector.load %arg7[%c0_22, %c0_23] : memref<8x1xf32, #tpu.memory_space<vmem>>, vector<8x1xf32>
        tpu.vector_store %arg7[%c0_22, %c0_23], %34 {strides = array<i32>} : memref<8x1xf32, #tpu.memory_space<vmem>>, vector<8x1xf32>,
        %cst_24 = arith.constant 0.000000e+00 : f32
        %36 = vector.broadcast %cst_24 : f32 to vector<8x1xf32>
        %c0_25 = arith.constant 0 : index
        %c0_26 = arith.constant 0 : index
        %37 = vector.load %arg8[%c0_25, %c0_26] : memref<8x1xf32, #tpu.memory_space<vmem>>, vector<8x1xf32>
        tpu.vector_store %arg8[%c0_25, %c0_26], %36 {strides = array<i32>} : memref<8x1xf32, #tpu.memory_space<vmem>>, vector<8x1xf32>,
      } else {
      }
      %c0_9 = arith.constant 0 : index
      %c0_10 = arith.constant 0 : index
      %15 = vector.load %arg7[%c0_9, %c0_10] : memref<8x1xf32, #tpu.memory_space<vmem>>, vector<8x1xf32>
      %cst_11 = arith.constant dense<0xFF800000> : vector<8xf32>
      %16 = vector.multi_reduction <maximumf>, %5, %cst_11 [1] : vector<8x128xf32> to vector<8xf32>
      %17 = vector.shape_cast %16 : vector<8xf32> to vector<8x1xf32>
      %18 = arith.maximumf %15, %17 : vector<8x1xf32>
      %c0_12 = arith.constant 0 : index
      %c0_13 = arith.constant 0 : index
      %19 = vector.load %arg8[%c0_12, %c0_13] : memref<8x1xf32, #tpu.memory_space<vmem>>, vector<8x1xf32>
      %20 = arith.subf %15, %18 : vector<8x1xf32>
      %21 = math.exp %20 : vector<8x1xf32>
      %22 = arith.mulf %19, %21 : vector<8x1xf32>
      %23 = vector.broadcast %18 : vector<8x1xf32> to vector<8x128xf32>
      %24 = arith.subf %5, %23 : vector<8x128xf32>
      %25 = math.exp %24 : vector<8x128xf32>
      %cst_14 = arith.constant dense<0.000000e+00> : vector<8xf32>
      %26 = vector.multi_reduction <add>, %25, %cst_14 [1] : vector<8x128xf32> to vector<8xf32>
      %27 = vector.shape_cast %26 : vector<8xf32> to vector<8x1xf32>
      %28 = arith.addf %22, %27 : vector<8x1xf32>
      %c0_15 = arith.constant 0 : index
      %c0_16 = arith.constant 0 : index
      %29 = vector.load %arg8[%c0_15, %c0_16] : memref<8x1xf32, #tpu.memory_space<vmem>>, vector<8x1xf32>
      tpu.vector_store %arg8[%c0_15, %c0_16], %28 {strides = array<i32>} : memref<8x1xf32, #tpu.memory_space<vmem>>, vector<8x1xf32>,
      %c0_17 = arith.constant 0 : index
      %c0_18 = arith.constant 0 : index
      %30 = vector.load %arg7[%c0_17, %c0_18] : memref<8x1xf32, #tpu.memory_space<vmem>>, vector<8x1xf32>
      tpu.vector_store %arg7[%c0_17, %c0_18], %18 {strides = array<i32>} : memref<8x1xf32, #tpu.memory_space<vmem>>, vector<8x1xf32>,
      %c0_i32_19 = arith.constant 0 : i32
      %31 = arith.cmpi eq, %arg2, %c0_i32_19 : i32
      %32 = arith.extui %31 : i1 to i32
      %c0_i32_20 = arith.constant 0 : i32
      %33 = arith.cmpi ne, %32, %c0_i32_20 : i32
      scf.if %33 {
        %c0_21 = arith.constant 0 : index
        %c0_22 = arith.constant 0 : index
        %34 = vector.load %arg7[%c0_21, %c0_22] : memref<8x1xf32, #tpu.memory_space<vmem>>, vector<8x1xf32>
        %c0_23 = arith.constant 0 : index
        %c0_24 = arith.constant 0 : index
        %35 = vector.load %arg8[%c0_23, %c0_24] : memref<8x1xf32, #tpu.memory_space<vmem>>, vector<8x1xf32>
        %36 = math.log %35 : vector<8x1xf32>
        %37 = arith.addf %34, %36 : vector<8x1xf32>
        %c0_25 = arith.constant 0 : index
        %c0_26 = arith.constant 0 : index
        %38 = vector.load %arg9[%c0_25, %c0_26] : memref<8x1xf32, #tpu.memory_space<vmem>>, vector<8x1xf32>
        tpu.vector_store %arg9[%c0_25, %c0_26], %37 {strides = array<i32>} : memref<8x1xf32, #tpu.memory_space<vmem>>, vector<8x1xf32>,
      } else {
      }
    } else {
    }
    %c1_i32 = arith.constant 1 : i32
    %9 = arith.cmpi eq, %arg1, %c1_i32 : i32
    %10 = arith.extui %9 : i1 to i32
    %c0_i32_6 = arith.constant 0 : i32
    %11 = arith.cmpi ne, %10, %c0_i32_6 : i32
    scf.if %11 {
      %c0_7 = arith.constant 0 : index
      %c0_8 = arith.constant 0 : index
      %12 = vector.load %arg9[%c0_7, %c0_8] : memref<8x1xf32, #tpu.memory_space<vmem>>, vector<8x1xf32>
      %13 = vector.broadcast %12 : vector<8x1xf32> to vector<8x128xf32>
      %14 = arith.subf %5, %13 : vector<8x128xf32>
      %c0_9 = arith.constant 0 : index
      %c0_10 = arith.constant 0 : index
      %15 = vector.load %arg6[%c0_9, %c0_10] : memref<8x128xf32, #tpu.memory_space<vmem>>, vector<8x128xf32>
      tpu.vector_store %arg6[%c0_9, %c0_10], %14 {strides = array<i32>} : memref<8x128xf32, #tpu.memory_space<vmem>>, vector<8x128xf32>,
    } else {
    }
    return
  }
  func.func @transform_0(%arg0: i32, %arg1: i32, %arg2: i32) -> (i32, i32) {
    %c0_i32 = arith.constant 0 : i32
    %c0_i32_0 = arith.constant 0 : i32
    return %arg0, %c0_i32 : i32, i32
  }
  func.func @transform_1(%arg0: i32, %arg1: i32, %arg2: i32) -> (i32, i32) {
    %c0_i32 = arith.constant 0 : i32
    %c0_i32_0 = arith.constant 0 : i32
    return %c0_i32, %arg2 : i32, i32
  }
  func.func @transform_2(%arg0: i32, %arg1: i32, %arg2: i32) -> (i32, i32) {
    %c0_i32 = arith.constant 0 : i32
    %c0_i32_0 = arith.constant 0 : i32
    return %c0_i32, %arg2 : i32, i32
  }
  func.func @transform_3(%arg0: i32, %arg1: i32, %arg2: i32) -> (i32, i32) {
    %0 = arith.muli %arg2, %arg1 : i32
    %c0_i32 = arith.constant 0 : i32
    return %arg0, %0 : i32, i32
  }
}

</mosaic_0001>

<llo_original>
// kernel: masked_language_model.1
$region0: #{masked_language_model.1}
  #allocation0 [shape = 'u32[]', space=smem, size = 0x4, offset = 0x4, fixed_abs, tag = 'smem constant byte address 0x4 - core index']
  #allocation1 [shape = 'u32[144,128]{1,0:T(1,128)}', space=vmem, size = 0x12000, scoped, tag = 'internal scratch']
  #allocation2 [shape = 'f32[8,1]{1,0:T(8,128)}', space=vmem, size = 0x1000, scoped, tag = 'scratch operand']
  #allocation3 [shape = 'f32[8,1]{1,0:T(8,128)}', space=vmem, size = 0x1000, scoped, tag = 'scratch operand']
  #allocation4 [shape = 'f32[8,1]{1,0:T(8,128)}', space=vmem, size = 0x1000, scoped, tag = 'scratch operand']
  %s0 = inlined_call_operand.vmem [shape: bf16[16,32], index: 0, kind: input, shape index: {}]
  %s1 = inlined_call_operand.vmem [shape: bf16[32,128], index: 1, kind: input, shape index: {}]
  %s2 = inlined_call_operand.vmem [shape: f32[1,128], index: 2, kind: input, shape index: {}]
  %s3 = inlined_call_operand.hbm [shape: f32[16,128], index: 3, kind: output, shape index: {}]
  %s4 = sld [smem:[#allocation0]]
  $region61: #{masked_language_model.1} parent=0
    _
  %s6 = ssub.s32 1, %s4
  %s7 = scalar_select 0, %s6, %s4
  $region1: #{masked_language_model.1} parent=0
    #allocation5 [shape = 'u8[8192]{0}', space=vmem, size = 0x2000, scoped, tag = 'output window, operand 0']
    #allocation6 [shape = 's32[2]{0}', space=sflag, size = 0x8, scoped, tag = 'scoped memory for masked_language_model.1']
    %8 = vsyncpa [#allocation6], 0
    %s9 = scalar_lea.sflag [#allocation6], 1
    %10 = vsyncpa %s9, 0
    loop: start=0, step=1, limit=6
    $region2: #{masked_language_model.1} parent=1 // loop_pre_header
      _
    $region3: #{masked_language_model.1} parent=1 // loop_header
      %s12 = sphi 0, %s16
      %p13 = scmp.ge.s32.totalorder %s12, 6
      %s19 = sphi 0, %s38
      %s20 = sphi 0, %s34
      %s21 = sphi 0, %s30
      %s22 = sphi 0, %s19
      %s23 = sphi 0, %s20
      %s24 = sphi 0, %s21
      %s25 = sphi 0, %s22
      %s26 = sphi 0, %s23
      %s27 = sphi 0, %s24
      %s41 = sphi 0, %s43
      %s44 = sphi 0, %s41
      %s45 = sphi 0, %s44
      %s61 = sphi 0, %s45
      %s67 = sphi 0, %s69
      %s70 = sphi 0, %s67
      %s71 = sphi 0, %s70
      %s87 = sphi 0, %s71
      %s93 = sphi 0, %s95
      %s96 = sphi 0, %s93
      %s97 = sphi 0, %s96
      %s113 = sphi 0, %s97
      %s123 = sphi 0, %s125
      %s126 = sphi 0, %s123
      %s127 = sphi 0, %s126
      %s143 = sphi 0, %s127
    $region4: #{masked_language_model.1} parent=1 // loop_header_branch
      %15 = sbr.rel (%p13) target = $region8
    $region5: #{masked_language_model.1} parent=1 // loop_body
      %s17 = ssub.s32 %s12, 1
      %s18 = ssub.s32 %s12, 2
      %s28 = sadd.s32 1, %s21
      %p29 = scmp.ge.s32.totalorder %s28, 1
      %s30 = scalar_select %p29, 0, %s28
      %s31 = sadd.s32 1, %s20
      %s32 = scalar_select %p29, %s31, %s20
      %p33 = scmp.ge.s32.totalorder %s32, 2
      %s34 = scalar_select %p33, 0, %s32
      %s35 = sadd.s32 1, %s19
      %s36 = scalar_select %p33, %s35, %s19
      %p37 = scmp.ge.s32.totalorder %s36, 2
      %s38 = scalar_select %p37, 0, %s36
      %s39 = ssub.s32 %s19, %s38
      %p40 = scmp.eq.s32.totalorder %s39, 0
      %s42 = sadd.s32 %s41, 1
      %s43 = scalar_select %p40, %s41, %s42
      %p46 = pneg %p40
      %p47 = scmp.eq.s32.totalorder %s12, 3
      %p48 = por %p46, %p47
      %p49 = scmp.ne.s32.totalorder %s41, %s44
      %p50 = scmp.eq.s32.totalorder %s12, 0
      %p51 = por %p49, %p50
      %p52 = scmp.ne.s32.totalorder %s41, %s44
      %p53 = scmp.eq.s32.totalorder %s17, 3
      %p54 = por %p52, %p53
      %p55 = scmp.ne.s32.totalorder %s44, %s45
      %p56 = scmp.eq.s32.totalorder %s17, 0
      %p57 = por %p55, %p56
      %p58 = scmp.ne.s32.totalorder %s44, %s45
      %p59 = scmp.eq.s32.totalorder %s18, 3
      %p60 = por %p58, %p59
      %p62 = scmp.ne.s32.totalorder %s45, %s61
      %p63 = scmp.eq.s32.totalorder %s18, 0
      %p64 = por %p62, %p63
      %s65 = ssub.s32 %s21, %s30
      %p66 = scmp.eq.s32.totalorder %s65, 0
      %s68 = sadd.s32 %s67, 1
      %s69 = scalar_select %p66, %s67, %s68
      %p72 = pneg %p66
      %p73 = scmp.eq.s32.totalorder %s12, 3
      %p74 = por %p72, %p73
      %p75 = scmp.ne.s32.totalorder %s67, %s70
      %p76 = scmp.eq.s32.totalorder %s12, 0
      %p77 = por %p75, %p76
      %p78 = scmp.ne.s32.totalorder %s67, %s70
      %p79 = scmp.eq.s32.totalorder %s17, 3
      %p80 = por %p78, %p79
      %p81 = scmp.ne.s32.totalorder %s70, %s71
      %p82 = scmp.eq.s32.totalorder %s17, 0
      %p83 = por %p81, %p82
      %p84 = scmp.ne.s32.totalorder %s70, %s71
      %p85 = scmp.eq.s32.totalorder %s18, 3
      %p86 = por %p84, %p85
      %p88 = scmp.ne.s32.totalorder %s71, %s87
      %p89 = scmp.eq.s32.totalorder %s18, 0
      %p90 = por %p88, %p89
      %s91 = ssub.s32 %s21, %s30
      %p92 = scmp.eq.s32.totalorder %s91, 0
      %s94 = sadd.s32 %s93, 1
      %s95 = scalar_select %p92, %s93, %s94
      %p98 = pneg %p92
      %p99 = scmp.eq.s32.totalorder %s12, 3
      %p100 = por %p98, %p99
      %p101 = scmp.ne.s32.totalorder %s93, %s96
      %p102 = scmp.eq.s32.totalorder %s12, 0
      %p103 = por %p101, %p102
      %p104 = scmp.ne.s32.totalorder %s93, %s96
      %p105 = scmp.eq.s32.totalorder %s17, 3
      %p106 = por %p104, %p105
      %p107 = scmp.ne.s32.totalorder %s96, %s97
      %p108 = scmp.eq.s32.totalorder %s17, 0
      %p109 = por %p107, %p108
      %p110 = scmp.ne.s32.totalorder %s96, %s97
      %p111 = scmp.eq.s32.totalorder %s18, 3
      %p112 = por %p110, %p111
      %p114 = scmp.ne.s32.totalorder %s97, %s113
      %p115 = scmp.eq.s32.totalorder %s18, 0
      %p116 = por %p114, %p115
      %s117 = smul.u32 %s21, %s20
      %s118 = smul.u32 %s30, %s34
      %s119 = ssub.s32 %s19, %s38
      %s120 = ssub.s32 %s117, %s118
      %s121 = sor.u32 %s119, %s120
      %p122 = scmp.eq.s32.totalorder %s121, 0
      %s124 = sadd.s32 %s123, 1
      %s125 = scalar_select %p122, %s123, %s124
      %p128 = pneg %p122
      %p129 = scmp.eq.s32.totalorder %s12, 3
      %p130 = por %p128, %p129
      %p131 = scmp.ne.s32.totalorder %s123, %s126
      %p132 = scmp.eq.s32.totalorder %s12, 0
      %p133 = por %p131, %p132
      %p134 = scmp.ne.s32.totalorder %s123, %s126
      %p135 = scmp.eq.s32.totalorder %s17, 3
      %p136 = por %p134, %p135
      %p137 = scmp.ne.s32.totalorder %s126, %s127
      %p138 = scmp.eq.s32.totalorder %s17, 0
      %p139 = por %p137, %p138
      %p140 = scmp.ne.s32.totalorder %s126, %s127
      %p141 = scmp.eq.s32.totalorder %s18, 3
      %p142 = por %p140, %p141
      %p144 = scmp.ne.s32.totalorder %s127, %s143
      %p145 = scmp.eq.s32.totalorder %s18, 0
      %p146 = por %p144, %p145
      %p147 = scmp.le.s32.totalorder 1, %s12
      %p148 = scmp.lt.s32.totalorder %s12, 5
      %p149 = pnand %p147, %p148
      %p150 = pneg %p149
      // Predicated region
      $region9: #{masked_language_model.1} parent=5 // pred_check
        _
      $region10: #{masked_language_model.1} parent=5 // pred_check_branch
        %152 = sbr.rel (%p149) target = $region12
      $region11: #{masked_language_model.1} parent=5 // pred_region
        %s153 = ssub.s32 %s12, 1
        // Predicated region
        $region13: #{masked_language_model.1} parent=11 // pred_check
          %p154 = pneg %p83
        $region14: #{masked_language_model.1} parent=11 // pred_check_branch
          %156 = sbr.rel (%p154) target = $region16
        $region15: #{masked_language_model.1} parent=11 // pred_region
          %p157 = scmp.lt.s32.totalorder %s24, 0
          %s158 = scalar_select %p157, %s24, 0
          %s159 = smul.addr %s158, 4
          %s160 = scalar_lea.vmem %s1, %s159
        $region16: #{masked_language_model.1} parent=11 // pred_fallthru
          _
        // Predicated region
        $region17: #{masked_language_model.1} parent=11 // pred_check
          %p161 = pneg %p109
        $region18: #{masked_language_model.1} parent=11 // pred_check_branch
          %163 = sbr.rel (%p161) target = $region20
        $region19: #{masked_language_model.1} parent=11 // pred_region
          %p164 = scmp.lt.s32.totalorder %s24, 0
          %s165 = scalar_select %p164, %s24, 0
          %s166 = scalar_lea.vmem %s2, %s165
        $region20: #{masked_language_model.1} parent=11 // pred_fallthru
          _
      $region12: #{masked_language_model.1} parent=5 // pred_fallthru
        _
      %p167 = scmp.lt.s32.totalorder %s12, 4
      // Predicated region
      $region21: #{masked_language_model.1} parent=5 // pred_check
        %p168 = pneg %p167
      $region22: #{masked_language_model.1} parent=5 // pred_check_branch
        %170 = sbr.rel (%p168) target = $region24
      $region23: #{masked_language_model.1} parent=5 // pred_region
        // Predicated region
        $region25: #{masked_language_model.1} parent=23 // pred_check
          %p171 = pneg %p51
        $region26: #{masked_language_model.1} parent=23 // pred_check_branch
          %173 = sbr.rel (%p171) target = $region28
        $region27: #{masked_language_model.1} parent=23 // pred_region
          %p174 = scmp.lt.s32.totalorder %s19, 1
          %s175 = scalar_select %p174, %s19, 1
          %s176 = smul.addr %s175, 4
          %s177 = scalar_lea.vmem %s0, %s176
        $region28: #{masked_language_model.1} parent=23 // pred_fallthru
          _
      $region24: #{masked_language_model.1} parent=5 // pred_fallthru
        _
      %p178 = scmp.le.s32.totalorder 1, %s12
      %p179 = scmp.lt.s32.totalorder %s12, 5
      %p180 = pnand %p178, %p179
      %p181 = pneg %p180
      // Predicated region
      $region29: #{masked_language_model.1} parent=5 // pred_check
        _
      $region30: #{masked_language_model.1} parent=5 // pred_check_branch
        %183 = sbr.rel (%p180) target = $region32
      $region31: #{masked_language_model.1} parent=5 // pred_region
        %s184 = ssub.s32 %s12, 1
        %p185 = scmp.lt.s32.totalorder %s22, 1
        %s186 = scalar_select %p185, %s22, 1
        %s187 = smul.addr %s186, 4
        %s188 = scalar_lea.vmem %s0, %s187
        %p189 = pneg %p57
        %p190 = pneg %p54
        %p191 = scmp.lt.s32.totalorder %s24, 0
        %s192 = scalar_select %p191, %s24, 0
        %s193 = smul.addr %s192, 4
        %s194 = scalar_lea.vmem %s1, %s193
        %p195 = pneg %p83
        %p196 = pneg %p80
        %p197 = scmp.lt.s32.totalorder %s24, 0
        %s198 = scalar_select %p197, %s24, 0
        %s199 = scalar_lea.vmem %s2, %s198
        %p200 = pneg %p109
        %p201 = pneg %p106
        %p202 = pneg %p139
        %p203 = pneg %p136
        %s204 = sand.u32 %s126, 1
        %s205 = scalar_lea.sflag [#allocation6], %s204
        %s206 = sand.u32 %s126, 1
        %s207 = smul.addr %s206, 8
        %s208 = scalar_lea.vmem [#allocation5], %s207
        %p209 = scmp.lt.s32.totalorder %s22, 1
        %s210 = scalar_select %p209, %s22, 1
        %s211 = smul.addr %s210, 4
        %s212 = scalar_lea.vmem %s0, %s211
        %p213 = scmp.lt.s32.totalorder %s24, 0
        %s214 = scalar_select %p213, %s24, 0
        %s215 = smul.addr %s214, 4
        %s216 = scalar_lea.vmem %s1, %s215
        %p217 = scmp.lt.s32.totalorder %s24, 0
        %s218 = scalar_select %p217, %s24, 0
        %s219 = scalar_lea.vmem %s2, %s218
        %s220 = smul.u32 %s24, %s23
        %v222 = vld [vmem:[%s212] sm:$0xf]
        %v223 = vld [vmem:[%s216] sm:$0xf]
        %v224 = vld [vmem:[%s216 + $0x4] sm:$0xf]
        %v225 = vld [vmem:[%s216 + $0x8] sm:$0xf]
        %v226 = vld [vmem:[%s216 + $0xc] sm:$0xf]
        %v227 = vld [vmem:[%s219] sm:$0x1]
        %v229 = vlaneseq
        %v230 = vshrl.u32 %v229, 7
        %v231 = vsub.s32 0, %v230
        %v232 = vrot.slane %v227, %v231
        %v238 = vunpack.c.l.b16 %v223
        %v239 = vunpack.c.l.b16 %v224
        %v240 = vunpack.c.l.b16 %v225
        %v241 = vunpack.c.l.b16 %v226
        %v242 = vpack.c.b16 %v239, %v238
        %v243 = vpack.c.b16 %v241, %v240
        %vm246 = vcmask 261120
        %v248 = vsel %vm246, %v222, 0
        %250 = vmatprep.subr.bf16.mxu0 0
        %251 = vmatpush1.bf16.msra.mxu0 %v242
        %252 = vmatprep.subr.bf16.mxu0 0
        %253 = vmatpush1.bf16.msra.mxu0 %v243
        %254 = vmatprep.subr.bf16.mxu0 0
        %255 = vmatpush1.bf16.msra.mxu0 0
        %256 = vmatprep.subr.bf16.mxu0 0
        %257 = vmatpush1.bf16.msra.mxu0 0
        %258 = vmatprep.subr.bf16.mxu0 0
        %259 = vmatpush1.bf16.msra.mxu0 0
        %260 = vmatprep.subr.bf16.mxu0 0
        %261 = vmatpush1.bf16.msra.mxu0 0
        %262 = vmatprep.subr.bf16.mxu0 0
        %263 = vmatpush1.bf16.msra.mxu0 0
        %264 = vmatprep.subr.bf16.mxu0 0
        %265 = vmatpush1.bf16.msra.mxu0 0
        %266 = vmatprep.subr.bf16.mxu0 0
        %267 = vmatpush1.bf16.msra.mxu0 0
        %268 = vmatprep.subr.bf16.mxu0 0
        %269 = vmatpush1.bf16.msra.mxu0 0
        %270 = vmatprep.subr.bf16.mxu0 0
        %271 = vmatpush1.bf16.msra.mxu0 0
        %272 = vmatprep.subr.bf16.mxu0 0
        %273 = vmatpush1.bf16.msra.mxu0 0
        %274 = vmatprep.subr.bf16.mxu0 0
        %275 = vmatpush1.bf16.msra.mxu0 0
        %276 = vmatprep.subr.bf16.mxu0 0
        %277 = vmatpush1.bf16.msra.mxu0 0
        %278 = vmatprep.subr.bf16.mxu0 0
        %279 = vmatpush1.bf16.msra.mxu0 0
        %280 = vmatprep.subr.bf16.mxu0 0
        %281 = vmatpush1.bf16.msra.mxu0 0
        %282 = vmatprep.mubr.bf16.mxu0 0
        %283 = vmatmul.mubr.bf16.gmra.mrb[0].mxu0 %v248
        %v284 = vpop.f32.mrb[0].mxu0
        %v285 = vadd.f32 %v232, %v284
        %v286 = vpop.f32.mrb[0].mxu0
        %v287 = vpop.f32.mrb[0].mxu0
        %v288 = vpop.f32.mrb[0].mxu0
        %289 = vdwg.mxu0
        %p290 = scmp.eq.s32.totalorder %s23, 0
        // Predicated region
        $region33: #{masked_language_model.1} parent=31 // pred_check
          %p291 = pneg %p290
        $region34: #{masked_language_model.1} parent=31 // pred_check_branch
          %293 = sbr.rel (%p291) target = $region36
        $region35: #{masked_language_model.1} parent=31 // pred_region
          %p294 = scmp.eq.s32.totalorder %s24, 0
          // Predicated region
          $region37: #{masked_language_model.1} parent=35 // pred_check
            %p295 = pneg %p294
          $region38: #{masked_language_model.1} parent=35 // pred_check_branch
            %297 = sbr.rel (%p295) target = $region40
          $region39: #{masked_language_model.1} parent=35 // pred_region
            %vm298 = vcmask 7168
            %299 = vst.msk [vmem:[#allocation2] sm:$0xff] %vm298, -inf
            %300 = vst.msk [vmem:[#allocation3] sm:$0xff] %vm298, 0.0
          $region40: #{masked_language_model.1} parent=35 // pred_fallthru
            _
          %v301 = vld [vmem:[#allocation2] sm:$0xff]
          %302 = vmax.xlane.f32.xlu0 %v285
          %v303 = vpop.xlane.xlu0 %302
          %v304 = vmax.f32 %v301, %v303
          %v305 = vld [vmem:[#allocation3] sm:$0xff]
          %v306 = vsub.f32 %v301, %v304
          %v307 = vmul.f32 %v306, 1.442695
          %v308 = vpow.pop %v307
          %v309 = vmul.f32 %v305, %v308
          %311 = vset.pattern.permute.xlu0 0
          %312 = vperm.xlu0 %311, %v304
          %v313 = vpop.permute.xlu0 %312
          %v315 = vsub.f32 %v285, %v313
          %v316 = vmul.f32 %v315, 1.442695
          %v317 = vpow.pop %v316
          %318 = vadd.xlane.f32.xlu0 %v317
          %v319 = vpop.xlane.xlu0 %318
          %v320 = vadd.f32 %v309, %v319
          %vm321 = vcmask 7168
          %322 = vst.msk [vmem:[#allocation3] sm:$0xff] %vm321, %v320
          %323 = vst.msk [vmem:[#allocation2] sm:$0xff] %vm321, %v304
          // Predicated region
          $region41: #{masked_language_model.1} parent=35 // pred_check
            %p324 = pneg %p294
          $region42: #{masked_language_model.1} parent=35 // pred_check_branch
            %326 = sbr.rel (%p324) target = $region44
          $region43: #{masked_language_model.1} parent=35 // pred_region
            %v327 = vld [vmem:[#allocation2] sm:$0xff]
            %v328 = vld [vmem:[#allocation3] sm:$0xff]
            %v329 = vlog2.pop %v328
            %v330 = vmul.f32 %v329, 0.6931472
            %v331 = vadd.f32 %v327, %v330
            %332 = vst.msk [vmem:[#allocation4] sm:$0xff] %vm321, %v331
          $region44: #{masked_language_model.1} parent=35 // pred_fallthru
            _
        $region36: #{masked_language_model.1} parent=31 // pred_fallthru
          _
        %p333 = scmp.eq.s32.totalorder %s23, 1
        // Predicated region
        $region45: #{masked_language_model.1} parent=31 // pred_check
          %p334 = pneg %p333
        $region46: #{masked_language_model.1} parent=31 // pred_check_branch
          %336 = sbr.rel (%p334) target = $region48
        $region47: #{masked_language_model.1} parent=31 // pred_region
          %v337 = vld [vmem:[#allocation4] sm:$0xff]
          %339 = vset.pattern.permute.xlu0 0
          %340 = vperm.xlu0 %339, %v337
          %v341 = vpop.permute.xlu0 %340
          %v343 = vsub.f32 %v285, %v341
          %344 = vst [vmem:[%s208] sm:$0xff] %v343
        $region48: #{masked_language_model.1} parent=31 // pred_fallthru
          _
        %s345 = sand.u32 %s126, 1
        %s346 = scalar_lea.sflag [#allocation6], %s345
        %s347 = sand.u32 %s126, 1
        %s348 = smul.addr %s347, 8
        %s349 = scalar_lea.vmem [#allocation5], %s348
        // Predicated region
        $region49: #{masked_language_model.1} parent=31 // pred_check
          %p350 = pneg %p136
        $region50: #{masked_language_model.1} parent=31 // pred_check_branch
          %352 = sbr.rel (%p350) target = $region52
        $region51: #{masked_language_model.1} parent=31 // pred_region
          %s353 = smul.u32 %s24, %s23
          %s355 = ssub.s32 128, 128
          %356 = vsyncadd %s346, %s355
          %s357 = sadd.s32 %s353, %s22
          %s358 = smul.addr %s357, 128
          %s359 = scalar_lea.hbm %s3, %s358
          %s361 = sshll.u32 %s349, 4
          %s362 = int_to_ptr.vmem [resolvable:$true] %s361
          %364 = dma.vmem_to_hbm [thread:$0]  %s362, 128, %s359, %s346
        $region52: #{masked_language_model.1} parent=31 // pred_fallthru
          _
      $region32: #{masked_language_model.1} parent=5 // pred_fallthru
        _
      %p365 = scmp.le.s32.totalorder 2, %s12
      // Predicated region
      $region53: #{masked_language_model.1} parent=5 // pred_check
        %p366 = pneg %p365
      $region54: #{masked_language_model.1} parent=5 // pred_check_branch
        %368 = sbr.rel (%p366) target = $region56
      $region55: #{masked_language_model.1} parent=5 // pred_region
        %s369 = ssub.s32 %s12, 2
        // Predicated region
        $region57: #{masked_language_model.1} parent=55 // pred_check
          %p370 = pneg %p142
        $region58: #{masked_language_model.1} parent=55 // pred_check_branch
          %372 = sbr.rel (%p370) target = $region60
        $region59: #{masked_language_model.1} parent=55 // pred_region
          %s373 = sand.u32 %s127, 1
          %s374 = scalar_lea.sflag [#allocation6], %s373
          %s375 = sand.u32 %s127, 1
          %s376 = smul.addr %s375, 8
          %s377 = scalar_lea.vmem [#allocation5], %s376
          %378 = dma.done %s374, 128
        $region60: #{masked_language_model.1} parent=55 // pred_fallthru
          _
      $region56: #{masked_language_model.1} parent=5 // pred_fallthru
        _
    $region6: #{masked_language_model.1} parent=1 // loop_footer
      %s16 = sadd.s32 1, %s12
    $region7: #{masked_language_model.1} parent=1 // loop_footer_branch
      %11 = sbr.rel target = $region3
    $region8: #{masked_language_model.1} parent=1 // loop_exit
      _
    %379 = vsyncpa [#allocation6], 1
    %s380 = scalar_lea.sflag [#allocation6], 1
    %381 = vsyncpa %s380, 1

</llo_original>
